<compile_context>
chip_gen: v7x
topology: tpu7x:2x2x1
jax: 0.10.0
libtpu: 0.0.40
codegen_flags: <defaults>
</compile_context>

<pallas_src>
import functools

import jax
import jax.numpy as jnp
from jax import lax
from jax.experimental import pallas as pl
from jax.experimental.pallas import tpu as pltpu


_FIXED_SHIFT_MAX_INV_TAU = 32.0   # keeps exp(-2/tau) far from f32 underflow


def _round_up(x: int, m: int) -> int:
    return ((x + m - 1) // m) * m


def _vmem_capacity_bytes() -> int:
    try:
        return int(pltpu.get_tpu_info().vmem_capacity_bytes)
    except Exception:
        return 64 << 20          # conservative (v7x-sized) fallback


def _choose_tiles(n: int, d: int, feat_bytes: int, vmem_cap: int):
    """Pick (TM, TN, N_pad) so both tiles divide N_pad and the declared
    double-buffered blocks fit comfortably in this generation's VMEM."""
    budget = max(int(vmem_cap * 0.5), 24 << 20)
    n_pad_small = _round_up(max(n, 1), 128)            # lane-dense sim tiles
    if n <= 1024 and 3 * n_pad_small * d * feat_bytes <= budget:
        # Whole problem fits: full-width column tile; split rows into >=2
        # tiles so both v7x TensorCores get work via the "parallel" axis.
        tm = n_pad_small // 2 if n_pad_small >= 256 else n_pad_small
        return tm, n_pad_small, n_pad_small
    # Large N (or large D): fixed column tile, row tile grown into the budget.
    tn = 512 if 2 * 512 * d * feat_bytes <= budget // 2 else 256
    fixed = 2 * tn * d * feat_bytes                    # double-buffered gcol
    per_tm = 2 * d * feat_bytes + 3 * tn * 4           # grow (dbl-buf) + f32 temps
    tm_raw = max(128, (budget - fixed) // max(per_tm, 1))
    tm = 128
    for cand in (1024, 512, 256, 128):
        if cand <= tm_raw:
            tm = cand
            break
    # TODO(synk): add a D (contraction) grid axis + f32 accumulator for feature
    # dims so large that even (128 + tn, D) double-buffered blocks miss budget.
    n_pad = _round_up(n, max(tm, tn))
    return tm, tn, n_pad


def _norm_tile(n_pad: int, d: int) -> int:
    """Row tile for the normalize prologue (independent of the matmul TM)."""
    limit = max(128, (8 << 20) // max(4 * d, 1))       # ~8 MiB f32 input block
    for t in (n_pad, 1024, 512, 256, 128):
        if t <= n_pad and n_pad % t == 0 and t <= limit:
            return t
    return 128


# --------------------------------------------------------------------------- #
# 1. normalization prologue:  g = x / max(||x||, 1e-12) * tau**-0.5   (bf16 out)
# --------------------------------------------------------------------------- #
def _normalize_kernel(x_ref, g_ref, *, scale: float):
    x = x_ref[...].astype(jnp.float32)
    sumsq = jnp.sum(x * x, axis=1, keepdims=True)
    # 1/max(||x||,1e-12) == rsqrt(max(||x||^2,1e-24)); rsqrt runs on the EUP.
    inv = lax.rsqrt(jnp.maximum(sumsq, jnp.float32(1e-24))) * jnp.float32(scale)
    g_ref[...] = (x * inv).astype(g_ref.dtype)


# --------------------------------------------------------------------------- #
# 2. tiled similarity + per-row log-sum-exp over all non-diagonal columns
# --------------------------------------------------------------------------- #
def _ntxent_lse_kernel(grow_ref, gcol_ref, out_ref, *scratch,
                       tm: int, tn: int, n_valid: int, n_pad: int,
                       shift: float, fixed_shift: bool):
    if fixed_shift:
        (l_sc,) = scratch
        m_sc = None
    else:
        m_sc, l_sc = scratch

    i = pl.program_id(0)          # row tile (parallel, megacore)
    j = pl.program_id(1)          # column tile (reduction axis, last)
    row_start = i * tm
    col_start = j * tn

    @pl.when(j == 0)
    def _init():
        l_sc[...] = jnp.zeros_like(l_sc)
        if not fixed_shift:
            m_sc[...] = jnp.full_like(m_sc, -jnp.inf)

    # (TM, TN) tile of sim/tau straight off the MXU: bf16 operands, f32 acc,
    # contraction over the last dim of both operands (no fn.T materialization).
    s = lax.dot_general(grow_ref[...], gcol_ref[...],
                        dimension_numbers=(((1,), (1,)), ((), ())),
                        preferred_element_type=jnp.float32)

    def accumulate(s_tile):
        if fixed_shift:
            # cos-sim <= 1  =>  s <= 1/tau: constant shift, no running max,
            # no alpha rescale, no m scratch.
            l_sc[...] += jnp.sum(jnp.exp(s_tile - jnp.float32(shift)),
                                 axis=1, keepdims=True)
        else:
            m_prev = m_sc[...]
            m_new = jnp.maximum(m_prev, jnp.max(s_tile, axis=1, keepdims=True))
            alpha = jnp.exp(m_prev - m_new)
            l_sc[...] = alpha * l_sc[...] + jnp.sum(jnp.exp(s_tile - m_new),
                                                    axis=1, keepdims=True)
            m_sc[...] = m_new

    # Mask the self-similarity diagonal and zero-padded columns only in the
    # tiles that can actually contain them.
    diag_hit = jnp.logical_and(col_start < row_start + tm,
                               row_start < col_start + tn)
    if n_pad > n_valid:
        need_mask = jnp.logical_or(diag_hit, col_start + tn > n_valid)
    else:
        need_mask = diag_hit

    @pl.when(need_mask)
    def _masked():
        rr = lax.broadcasted_iota(jnp.int32, (tm, tn), 0) + row_start
        cc = lax.broadcasted_iota(jnp.int32, (tm, tn), 1) + col_start
        bad = rr == cc
        if n_pad > n_valid:
            bad = jnp.logical_or(bad, cc >= n_valid)
        accumulate(jnp.where(bad, jnp.float32(-1e30), s))

    @pl.when(jnp.logical_not(need_mask))
    def _plain():
        accumulate(s)

    @pl.when(j == pl.num_programs(1) - 1)
    def _finalize():
        # (TM, 1) store is lane-sparse, but it is written only once per row
        # tile so its traffic is negligible next to the gcol streaming.
        if fixed_shift:
            out_ref[...] = jnp.float32(shift) + jnp.log(l_sc[...])
        else:
            out_ref[...] = m_sc[...] + jnp.log(l_sc[...])


# --------------------------------------------------------------------------- #
# 3. wrapper
# --------------------------------------------------------------------------- #
def ntxent_loss(xi: jax.Array, xj: jax.Array, tau: float = 1.0, *,
                use_bf16: bool = True, lse_mode: str = "auto") -> jax.Array:
    """xi, xj: (B, D). Returns the scalar NT-Xent loss (float32)."""
    assert xi.shape == xj.shape and xi.ndim == 2
    b, d = xi.shape
    n = 2 * b
    inv_tau = 1.0 / float(tau)
    if lse_mode == "auto":
        fixed_shift = inv_tau <= _FIXED_SHIFT_MAX_INV_TAU
    else:
        fixed_shift = (lse_mode == "fixed")

    feat_dtype = jnp.bfloat16 if use_bf16 else jnp.float32
    feat_bytes = 2 if use_bf16 else 4
    vmem_cap = _vmem_capacity_bytes()
    vmem_limit = max(32 << 20, min(vmem_cap - (16 << 20), 96 << 20))
    tm, tn, n_pad = _choose_tiles(n, d, feat_bytes, vmem_cap)

    # concat + zero-pad in one pass; zero rows normalize to zero rows.  (glue)
    feats = jnp.concatenate(
        [xi.astype(jnp.float32), xj.astype(jnp.float32),
         jnp.zeros((n_pad - n, d), jnp.float32)], axis=0)

    # --- prologue: L2 normalize, fold 1/sqrt(tau), emit bf16 ---------------- #
    tm_norm = _norm_tile(n_pad, d)
    g = pl.pallas_call(
        functools.partial(_normalize_kernel, scale=float(tau) ** -0.5),
        out_shape=jax.ShapeDtypeStruct((n_pad, d), feat_dtype),
        grid_spec=pltpu.PrefetchScalarGridSpec(
            num_scalar_prefetch=0,
            grid=(n_pad // tm_norm,),
            in_specs=[pl.BlockSpec((tm_norm, d), lambda i: (i, 0))],
            out_specs=pl.BlockSpec((tm_norm, d), lambda i: (i, 0)),
        ),
        compiler_params=pltpu.CompilerParams(
            dimension_semantics=("parallel",),
            vmem_limit_bytes=vmem_limit),
    )(feats)

    # --- main tiled kernel: per-row LSE over all non-diagonal columns ------- #
    kernel = functools.partial(
        _ntxent_lse_kernel, tm=tm, tn=tn, n_valid=n, n_pad=n_pad,
        shift=inv_tau, fixed_shift=fixed_shift)
    if fixed_shift:
        scratch_shapes = [pltpu.VMEM((tm, 1), jnp.float32)]               # sum
    else:
        scratch_shapes = [pltpu.VMEM((tm, 1), jnp.float32),               # max
                          pltpu.VMEM((tm, 1), jnp.float32)]               # sum
    lse = pl.pallas_call(
        kernel,
        out_shape=jax.ShapeDtypeStruct((n_pad, 1), jnp.float32),
        grid_spec=pltpu.PrefetchScalarGridSpec(
            num_scalar_prefetch=0,
            grid=(n_pad // tm, n_pad // tn),
            in_specs=[pl.BlockSpec((tm, d), lambda i, j: (i, 0)),   # row block
                      pl.BlockSpec((tn, d), lambda i, j: (j, 0))],  # col block
            out_specs=pl.BlockSpec((tm, 1), lambda i, j: (i, 0)),
            scratch_shapes=scratch_shapes),
        compiler_params=pltpu.CompilerParams(
            dimension_semantics=("parallel", "arbitrary"),
            vmem_limit_bytes=vmem_limit),
    )(g, g)

    # Positive-pair logit <g_i, g_{(i+B) mod N}>: identical for rows i and i+B,
    # so an O(B*D) elementwise dot — no rolled N x D copy; carries 1/tau.
    gv = g[:n].astype(jnp.float32)
    pos_half = jnp.sum(gv[:b] * gv[b:], axis=1)
    pos = jnp.concatenate([pos_half, pos_half], axis=0)                  # (N,)

    # Cross-entropy with label 0: mean over valid rows of (lse - positive).
    return jnp.mean(lse[:n, 0] - pos)


# --------------------------------------------------------------------------- #
# reference + demo
# --------------------------------------------------------------------------- #
def _ntxent_ref(xi, xj, tau=1.0):
    # pure-JAX reference mirroring the PyTorch module
    f = jnp.concatenate([xi, xj], axis=0).astype(jnp.float32)
    f = f / jnp.maximum(jnp.linalg.norm(f, axis=1, keepdims=True), 1e-12)
    sim = f @ f.T
    n = sim.shape[0]
    b = n // 2
    mask = jnp.eye(n, dtype=bool)
    labels = (jnp.arange(n) % b)[:, None] == (jnp.arange(n) % b)[None, :]
    sim_nd = sim[~mask].reshape(n, n - 1)
    lab_nd = labels[~mask].reshape(n, n - 1)
    positives = sim_nd[lab_nd].reshape(n, 1)
    negatives = sim_nd[~lab_nd].reshape(n, n - 2)
    logits = jnp.concatenate([positives, negatives], axis=1) / tau
    lse = jax.nn.logsumexp(logits, axis=1)
    return jnp.mean(lse - logits[:, 0])


if __name__ == "__main__":
    key = jax.random.PRNGKey(0)
    k1, k2 = jax.random.split(key)
    B, D = 8, 32
    xi = jax.random.normal(k1, (B, D), dtype=jnp.float32)
    xj = jax.random.normal(k2, (B, D), dtype=jnp.float32)

    # Default fast path: bf16 MXU operands + fixed-shift LSE (bf16 ~1e-3 error).
    loss = ntxent_loss(xi, xj, tau=1.0)
    jax.block_until_ready(loss)
    ref = _ntxent_ref(xi, xj, tau=1.0)
    assert jnp.allclose(loss, ref, atol=2e-2, rtol=2e-2), (loss, ref)

    # Fallback path: f32 operands + online (running-max) LSE.
    loss32 = ntxent_loss(xi, xj, tau=0.2, use_bf16=False, lse_mode="online")
    jax.block_until_ready(loss32)
    ref32 = _ntxent_ref(xi, xj, tau=0.2)
    assert jnp.allclose(loss32, ref32, atol=1e-4, rtol=1e-4), (loss32, ref32)

    print("KERNEL_OK")
</pallas_src>

<mosaic_0001>
module attributes {stable_mosaic.version = 11 : i64} {
  func.func @_normalize_kernel(%arg0: i32, %arg1: memref<128x32xf32, #tpu.memory_space<vmem>>, %arg2: memref<128x32xbf16, #tpu.memory_space<vmem>>) attributes {dimension_semantics = [#tpu.dimension_semantics<parallel>], iteration_bounds = array<i64: 1>, scalar_prefetch = 0 : i64, scratch_operands = 0 : i64, tpu.core_type = #tpu.core_type<tc>, window_params = [{transform_indices = @transform_0, window_bounds = array<i64: 128, 32>}, {transform_indices = @transform_1, window_bounds = array<i64: 128, 32>}]} {
    %c0 = arith.constant 0 : index
    %c0_0 = arith.constant 0 : index
    %0 = vector.load %arg1[%c0, %c0_0] : memref<128x32xf32, #tpu.memory_space<vmem>>, vector<128x32xf32>
    %1 = arith.mulf %0, %0 : vector<128x32xf32>
    %cst = arith.constant dense<0.000000e+00> : vector<128xf32>
    %2 = vector.multi_reduction <add>, %1, %cst [1] : vector<128x32xf32> to vector<128xf32>
    %3 = vector.shape_cast %2 : vector<128xf32> to vector<128x1xf32>
    %cst_1 = arith.constant 1.000000e-24 : f32
    %4 = vector.broadcast %cst_1 : f32 to vector<128x1xf32>
    %5 = arith.maximumf %3, %4 : vector<128x1xf32>
    %6 = math.rsqrt %5 : vector<128x1xf32>
    %cst_2 = arith.constant 1.000000e+00 : f32
    %7 = vector.broadcast %cst_2 : f32 to vector<128x1xf32>
    %8 = arith.mulf %6, %7 : vector<128x1xf32>
    %9 = vector.broadcast %8 : vector<128x1xf32> to vector<128x32xf32>
    %10 = arith.mulf %0, %9 : vector<128x32xf32>
    %11 = arith.truncf %10 : vector<128x32xf32> to vector<128x32xbf16>
    %c0_3 = arith.constant 0 : index
    %c0_4 = arith.constant 0 : index
    %12 = vector.load %arg2[%c0_3, %c0_4] : memref<128x32xbf16, #tpu.memory_space<vmem>>, vector<128x32xbf16>
    tpu.vector_store %arg2[%c0_3, %c0_4], %11 {strides = array<i32>} : memref<128x32xbf16, #tpu.memory_space<vmem>>, vector<128x32xbf16>,
    return
  }
  func.func @transform_0(%arg0: i32) -> (i32, i32) {
    %c0_i32 = arith.constant 0 : i32
    %c0_i32_0 = arith.constant 0 : i32
    return %arg0, %c0_i32 : i32, i32
  }
  func.func @transform_1(%arg0: i32) -> (i32, i32) {
    %c0_i32 = arith.constant 0 : i32
    %c0_i32_0 = arith.constant 0 : i32
    return %arg0, %c0_i32 : i32, i32
  }
}

</mosaic_0001>

<llo_original>
// kernel: tpu_custom_call.1
$region0: #{tpu_custom_call.1}
  #allocation0 [shape = 'u32[]', space=smem, size = 0x4, offset = 0x4, fixed_abs, tag = 'smem constant byte address 0x4 - core index']
  #allocation1 [shape = 'u32[144,128]{1,0:T(1,128)}', space=vmem, size = 0x12000, scoped, tag = 'internal scratch']
  %s0 = inlined_call_operand.vmem [shape: f32[128,32], index: 0, kind: input, shape index: {}]
  %s1 = inlined_call_operand.vmem [shape: bf16[128,32], index: 1, kind: output, shape index: {}]
  %s2 = sld [smem:[#allocation0]]
  $region14: #{tpu_custom_call.1} parent=0
    _
  %s4 = ssub.s32 1, %s2
  %s5 = scalar_select 0, %s4, %s2
  // Predicated region
  $region2: #{tpu_custom_call.1} parent=0 // pred_check
    _
  $region3: #{tpu_custom_call.1} parent=0 // pred_check_branch
    %7 = sbr.rel (0) target = $region5
  $region4: #{tpu_custom_call.1} parent=0 // pred_region
    _
  $region5: #{tpu_custom_call.1} parent=0 // pred_fallthru
    _
  %v8 = vld [vmem:[%s0] sm:$0xff]
  %v9 = vld [vmem:[%s0 + $0x8] sm:$0xff]
  %v10 = vld [vmem:[%s0 + $0x10] sm:$0xff]
  %v11 = vld [vmem:[%s0 + $0x18] sm:$0xff]
  %v12 = vld [vmem:[%s0 + $0x20] sm:$0xff]
  %v13 = vld [vmem:[%s0 + $0x28] sm:$0xff]
  %v14 = vld [vmem:[%s0 + $0x30] sm:$0xff]
  %v15 = vld [vmem:[%s0 + $0x38] sm:$0xff]
  %v16 = vld [vmem:[%s0 + $0x40] sm:$0xff]
  %v17 = vld [vmem:[%s0 + $0x48] sm:$0xff]
  %v18 = vld [vmem:[%s0 + $0x50] sm:$0xff]
  %v19 = vld [vmem:[%s0 + $0x58] sm:$0xff]
  %v20 = vld [vmem:[%s0 + $0x60] sm:$0xff]
  %v21 = vld [vmem:[%s0 + $0x68] sm:$0xff]
  %v22 = vld [vmem:[%s0 + $0x70] sm:$0xff]
  %v23 = vld [vmem:[%s0 + $0x78] sm:$0xff]
  %v24 = vmul.f32 %v8, %v8
  %v25 = vmul.f32 %v9, %v9
  %v26 = vmul.f32 %v10, %v10
  %v27 = vmul.f32 %v11, %v11
  %v28 = vmul.f32 %v12, %v12
  %v29 = vmul.f32 %v13, %v13
  %v30 = vmul.f32 %v14, %v14
  %v31 = vmul.f32 %v15, %v15
  %v32 = vmul.f32 %v16, %v16
  %v33 = vmul.f32 %v17, %v17
  %v34 = vmul.f32 %v18, %v18
  %v35 = vmul.f32 %v19, %v19
  %v36 = vmul.f32 %v20, %v20
  %v37 = vmul.f32 %v21, %v21
  %v38 = vmul.f32 %v22, %v22
  %v39 = vmul.f32 %v23, %v23
  %vm40 = vcmask 261120
  %v41 = vsel %vm40, %v24, 0.0
  %42 = vadd.xlane.f32.xlu0 %v41
  %v43 = vpop.xlane.xlu0 %42
  %v44 = vsel %vm40, %v25, 0.0
  %45 = vadd.xlane.f32.xlu0 %v44
  %v46 = vpop.xlane.xlu0 %45
  %v47 = vsel %vm40, %v26, 0.0
  %48 = vadd.xlane.f32.xlu0 %v47
  %v49 = vpop.xlane.xlu0 %48
  %v50 = vsel %vm40, %v27, 0.0
  %51 = vadd.xlane.f32.xlu0 %v50
  %v52 = vpop.xlane.xlu0 %51
  %v53 = vsel %vm40, %v28, 0.0
  %54 = vadd.xlane.f32.xlu0 %v53
  %v55 = vpop.xlane.xlu0 %54
  %v56 = vsel %vm40, %v29, 0.0
  %57 = vadd.xlane.f32.xlu0 %v56
  %v58 = vpop.xlane.xlu0 %57
  %v59 = vsel %vm40, %v30, 0.0
  %60 = vadd.xlane.f32.xlu0 %v59
  %v61 = vpop.xlane.xlu0 %60
  %v62 = vsel %vm40, %v31, 0.0
  %63 = vadd.xlane.f32.xlu0 %v62
  %v64 = vpop.xlane.xlu0 %63
  %v65 = vsel %vm40, %v32, 0.0
  %66 = vadd.xlane.f32.xlu0 %v65
  %v67 = vpop.xlane.xlu0 %66
  %v68 = vsel %vm40, %v33, 0.0
  %69 = vadd.xlane.f32.xlu0 %v68
  %v70 = vpop.xlane.xlu0 %69
  %v71 = vsel %vm40, %v34, 0.0
  %72 = vadd.xlane.f32.xlu0 %v71
  %v73 = vpop.xlane.xlu0 %72
  %v74 = vsel %vm40, %v35, 0.0
  %75 = vadd.xlane.f32.xlu0 %v74
  %v76 = vpop.xlane.xlu0 %75
  %v77 = vsel %vm40, %v36, 0.0
  %78 = vadd.xlane.f32.xlu0 %v77
  %v79 = vpop.xlane.xlu0 %78
  %v80 = vsel %vm40, %v37, 0.0
  %81 = vadd.xlane.f32.xlu0 %v80
  %v82 = vpop.xlane.xlu0 %81
  %v83 = vsel %vm40, %v38, 0.0
  %84 = vadd.xlane.f32.xlu0 %v83
  %v85 = vpop.xlane.xlu0 %84
  %v86 = vsel %vm40, %v39, 0.0
  %87 = vadd.xlane.f32.xlu0 %v86
  %v88 = vpop.xlane.xlu0 %87
  %v89 = vmax.f32 %v43, 1e-24
  %v90 = vmax.f32 %v46, 1e-24
  %v91 = vmax.f32 %v49, 1e-24
  %v92 = vmax.f32 %v52, 1e-24
  %v93 = vmax.f32 %v55, 1e-24
  %v94 = vmax.f32 %v58, 1e-24
  %v95 = vmax.f32 %v61, 1e-24
  %v96 = vmax.f32 %v64, 1e-24
  %v97 = vmax.f32 %v67, 1e-24
  %v98 = vmax.f32 %v70, 1e-24
  %v99 = vmax.f32 %v73, 1e-24
  %v100 = vmax.f32 %v76, 1e-24
  %v101 = vmax.f32 %v79, 1e-24
  %v102 = vmax.f32 %v82, 1e-24
  %v103 = vmax.f32 %v85, 1e-24
  %v104 = vmax.f32 %v88, 1e-24
  %v105 = vrsqrt.pop %v89
  %v106 = vrsqrt.pop %v90
  %v107 = vrsqrt.pop %v91
  %v108 = vrsqrt.pop %v92
  %v109 = vrsqrt.pop %v93
  %v110 = vrsqrt.pop %v94
  %v111 = vrsqrt.pop %v95
  %v112 = vrsqrt.pop %v96
  %v113 = vrsqrt.pop %v97
  %v114 = vrsqrt.pop %v98
  %v115 = vrsqrt.pop %v99
  %v116 = vrsqrt.pop %v100
  %v117 = vrsqrt.pop %v101
  %v118 = vrsqrt.pop %v102
  %v119 = vrsqrt.pop %v103
  %v120 = vrsqrt.pop %v104
  %v121 = vmul.f32 %v8, %v105
  %v122 = vmul.f32 %v9, %v106
  %v123 = vmul.f32 %v10, %v107
  %v124 = vmul.f32 %v11, %v108
  %v125 = vmul.f32 %v12, %v109
  %v126 = vmul.f32 %v13, %v110
  %v127 = vmul.f32 %v14, %v111
  %v128 = vmul.f32 %v15, %v112
  %v129 = vmul.f32 %v16, %v113
  %v130 = vmul.f32 %v17, %v114
  %v131 = vmul.f32 %v18, %v115
  %v132 = vmul.f32 %v19, %v116
  %v133 = vmul.f32 %v20, %v117
  %v134 = vmul.f32 %v21, %v118
  %v135 = vmul.f32 %v22, %v119
  %v136 = vmul.f32 %v23, %v120
  %v137 = vpack.c.bf16 %v122, %v121
  %v138 = vpack.c.bf16 %v124, %v123
  %v139 = vpack.c.bf16 %v126, %v125
  %v140 = vpack.c.bf16 %v128, %v127
  %v141 = vpack.c.bf16 %v130, %v129
  %v142 = vpack.c.bf16 %v132, %v131
  %v143 = vpack.c.bf16 %v134, %v133
  %v144 = vpack.c.bf16 %v136, %v135
  %v153 = vunpack.c.l.b16 %v137
  %v154 = vunpack.c.h.b16 %v137
  %v155 = vunpack.c.l.b16 %v138
  %v156 = vunpack.c.h.b16 %v138
  %v157 = vunpack.c.l.b16 %v139
  %v158 = vunpack.c.h.b16 %v139
  %v159 = vunpack.c.l.b16 %v140
  %v160 = vunpack.c.h.b16 %v140
  %v161 = vunpack.c.l.b16 %v141
  %v162 = vunpack.c.h.b16 %v141
  %v163 = vunpack.c.l.b16 %v142
  %v164 = vunpack.c.h.b16 %v142
  %v165 = vunpack.c.l.b16 %v143
  %v166 = vunpack.c.h.b16 %v143
  %v167 = vunpack.c.l.b16 %v144
  %v168 = vunpack.c.h.b16 %v144
  %v169 = vpack.c.b16 %v153, %v153
  %v170 = vpack.c.b16 %v154, %v154
  %v171 = vpack.c.b16 %v155, %v155
  %v172 = vpack.c.b16 %v156, %v156
  %v173 = vpack.c.b16 %v157, %v157
  %v174 = vpack.c.b16 %v158, %v158
  %v175 = vpack.c.b16 %v159, %v159
  %v176 = vpack.c.b16 %v160, %v160
  %v177 = vpack.c.b16 %v161, %v161
  %v178 = vpack.c.b16 %v162, %v162
  %v179 = vpack.c.b16 %v163, %v163
  %v180 = vpack.c.b16 %v164, %v164
  %v181 = vpack.c.b16 %v165, %v165
  %v182 = vpack.c.b16 %v166, %v166
  %v183 = vpack.c.b16 %v167, %v167
  %v184 = vpack.c.b16 %v168, %v168
  %vm201 = vcmask 257024
  %202 = vst.msk [vmem:[%s1] sm:$0xf] %vm201, %v169
  %203 = vst.msk [vmem:[%s1 + $0x4] sm:$0xf] %vm201, %v170
  %204 = vst.msk [vmem:[%s1 + $0x8] sm:$0xf] %vm201, %v171
  %205 = vst.msk [vmem:[%s1 + $0xc] sm:$0xf] %vm201, %v172
  %206 = vst.msk [vmem:[%s1 + $0x10] sm:$0xf] %vm201, %v173
  %207 = vst.msk [vmem:[%s1 + $0x14] sm:$0xf] %vm201, %v174
  %208 = vst.msk [vmem:[%s1 + $0x18] sm:$0xf] %vm201, %v175
  %209 = vst.msk [vmem:[%s1 + $0x1c] sm:$0xf] %vm201, %v176
  %210 = vst.msk [vmem:[%s1 + $0x20] sm:$0xf] %vm201, %v177
  %211 = vst.msk [vmem:[%s1 + $0x24] sm:$0xf] %vm201, %v178
  %212 = vst.msk [vmem:[%s1 + $0x28] sm:$0xf] %vm201, %v179
  %213 = vst.msk [vmem:[%s1 + $0x2c] sm:$0xf] %vm201, %v180
  %214 = vst.msk [vmem:[%s1 + $0x30] sm:$0xf] %vm201, %v181
  %215 = vst.msk [vmem:[%s1 + $0x34] sm:$0xf] %vm201, %v182
  %216 = vst.msk [vmem:[%s1 + $0x38] sm:$0xf] %vm201, %v183
  %217 = vst.msk [vmem:[%s1 + $0x3c] sm:$0xf] %vm201, %v184
  // Predicated region
  $region6: #{tpu_custom_call.1} parent=0 // pred_check
    _
  $region7: #{tpu_custom_call.1} parent=0 // pred_check_branch
    %219 = sbr.rel (0) target = $region9
  $region8: #{tpu_custom_call.1} parent=0 // pred_region
    _
  $region9: #{tpu_custom_call.1} parent=0 // pred_fallthru
    _
  // Predicated region
  $region10: #{tpu_custom_call.1} parent=0 // pred_check
    _
  $region11: #{tpu_custom_call.1} parent=0 // pred_check_branch
    %221 = sbr.rel (0) target = $region13
  $region12: #{tpu_custom_call.1} parent=0 // pred_region
    _
  $region13: #{tpu_custom_call.1} parent=0 // pred_fallthru
    _

</llo_original>
